<compile_context>
chip_gen: v7x
topology: tpu7x:2x2x1
jax: 0.10.0
libtpu: 0.0.40
codegen_flags: <defaults>
</compile_context>

<pallas_src>
import functools

import jax
import jax.numpy as jnp
from jax.experimental import pallas as pl
from jax.experimental.pallas import tpu as pltpu


def _round_up(v, m):
    return ((v + m - 1) // m) * m


def _q2tl_kernel(s2m_ref, tgt_ref, x_ref, xm_ref, o_ref, *,
                 pseudo_conf_thres: float, true_batch: int, needs_mask: bool):
    # Lane-dense blocks: classes on sublanes, batch on lanes.
    x = x_ref[...].astype(jnp.float32)      # (Cs, TB) sub logits
    xm = xm_ref[...].astype(jnp.float32)    # (Cm, TB) main logits
    tgt = tgt_ref[...]                      # (1,  TB) int32 sub label
    s2m = s2m_ref[...]                      # (Cs, 1)  int32 sub -> main index

    Cs, TB = x.shape
    Cm = xm.shape[0]

    iota_s = jax.lax.broadcasted_iota(jnp.int32, (Cs, TB), 0)

    # ---- sub log-softmax pieces (only (1,TB) per-row values are kept) ----
    x_max = jnp.max(x, axis=0, keepdims=True)                       # (1, TB)
    den_s = jnp.sum(jnp.exp(x - x_max), axis=0, keepdims=True)      # (1, TB)
    log_den_s = jnp.log(den_s)                                      # (1, TB)

    # pseudo label = argmax over classes (first index on ties, matches ref)
    is_max = (x == x_max)
    pseudo = jnp.min(jnp.where(is_max, iota_s, Cs), axis=0, keepdims=True)

    mask_t = (iota_s == tgt)                                        # (Cs, TB)
    mask_p = (iota_s == pseudo)                                     # (Cs, TB)

    # gather-at-lane first, then compute per-row logp on (1,TB) vectors
    x_t = jnp.sum(jnp.where(mask_t, x, 0.0), axis=0, keepdims=True)
    logp_t = (x_t - x_max) - log_den_s                              # (1, TB)
    logp_p = -log_den_s                                             # x[pseudo] == x_max

    # main-class index of target / pseudo sub-class (mapping gather on the VPU)
    main_t = jnp.sum(jnp.where(mask_t, s2m, 0), axis=0, keepdims=True)  # (1,TB) i32
    main_p = jnp.sum(jnp.where(mask_p, s2m, 0), axis=0, keepdims=True)  # (1,TB) i32

    # ---- main softmax numerators: the denominator cancels in the lambdas ----
    iota_m = jax.lax.broadcasted_iota(jnp.int32, (Cm, TB), 0)
    xm_max = jnp.max(xm, axis=0, keepdims=True)                     # (1, TB)
    exm = jnp.exp(xm - xm_max)                                      # (Cm, TB)
    den_m = jnp.sum(exm, axis=0, keepdims=True)                     # (1, TB)
    e_t = jnp.sum(jnp.where(iota_m == main_t, exm, 0.0), axis=0, keepdims=True)
    e_p = jnp.sum(jnp.where(iota_m == main_p, exm, 0.0), axis=0, keepdims=True)

    # correction weights: prob_p >= thres  <=>  e_p >= thres * den_m
    cond = jnp.logical_and(tgt != pseudo,
                           e_p >= jnp.float32(pseudo_conf_thres) * den_m)
    lam_den = jnp.where(cond, e_t + e_p, 1.0)
    inv_lam = pl.reciprocal(lam_den, approx=False)   # exact: protects branch / 1e-5 tol
    lam_t = jnp.where(cond, e_t * inv_lam, 1.0)
    lam_c = jnp.where(cond, e_p * inv_lam, 0.0)

    # per-row cross-entropy with the (implicit) corrected one-hot target
    per_row = -(lam_t * logp_t + lam_c * logp_p)                    # (1, TB)

    if needs_mask:
        last = pl.num_programs(0) - 1

        @pl.when(pl.program_id(0) == last)
        def _():
            col = (jax.lax.broadcasted_iota(jnp.int32, (1, TB), 1)
                   + pl.program_id(0) * TB)
            masked = jnp.where(col < true_batch, per_row, 0.0)
            o_ref[...] = jnp.sum(masked, axis=1, keepdims=True)

        @pl.when(pl.program_id(0) != last)
        def _():
            o_ref[...] = jnp.sum(per_row, axis=1, keepdims=True)
    else:
        o_ref[...] = jnp.sum(per_row, axis=1, keepdims=True)


def q2tl_loss(x, target, x_main, sub2main, pseudo_conf_thres=0.2):
    """Mean Q2TL loss.

    x:        [B, Cs]  sub-class logits (any float dtype; cast in-kernel)
    target:   [B]      int sub-class labels
    x_main:   [B, Cm]  main-class logits
    sub2main: [Cs]     int sub->main class index vector (replaces mapping_file)
    """
    B, Cs = x.shape
    Cm = x_main.shape[1]
    dtype_bytes = jnp.dtype(x.dtype).itemsize

    # ---- batch tile on the lane axis ----
    if B <= 128:
        # single full-batch tile (block last dim == full dim is always legal)
        TB = B
        B_pad = B
    else:
        # ~8 MiB budget for double-buffered input tiles; adaptive to Cs/Cm/dtype.
        budget = 8 * 1024 * 1024
        per_col = 2 * ((max(Cs, 8) + max(Cm, 8)) * dtype_bytes + 8 * 4)
        tb = min(4096, max(128, budget // max(per_col, 1)))
        # >= 2 tiles so the "parallel" batch axis shards across both TensorCores
        # on v7x megacore.
        tb = min(tb, _round_up((B + 1) // 2, 128))
        TB = max(128, (tb // 128) * 128)
        B_pad = _round_up(B, TB)
    num_tiles = B_pad // TB
    needs_mask = (B_pad != B)

    # Lane-dense layout: batch -> lanes, classes -> sublanes.  One fused
    # transpose(+tail pad) relayout pass in XLA; layout plumbing that buys
    # ~16x better vreg/lane utilization for every per-row temporary.
    xT = jnp.swapaxes(x, 0, 1)                       # (Cs, B)
    xmT = jnp.swapaxes(x_main, 0, 1)                 # (Cm, B)
    tgt2d = target.reshape(1, B).astype(jnp.int32)   # (1,  B)
    s2m2d = sub2main.reshape(Cs, 1).astype(jnp.int32)

    if needs_mask:
        pad = B_pad - B
        xT = jnp.pad(xT, ((0, 0), (0, pad)))
        xmT = jnp.pad(xmT, ((0, 0), (0, pad)))
        tgt2d = jnp.pad(tgt2d, ((0, 0), (0, pad)))

    kernel = functools.partial(
        _q2tl_kernel,
        pseudo_conf_thres=float(pseudo_conf_thres),
        true_batch=B,
        needs_mask=needs_mask)

    partials = pl.pallas_call(
        kernel,
        out_shape=jax.ShapeDtypeStruct((num_tiles, 1), jnp.float32),
        grid=(num_tiles,),
        in_specs=[
            pl.BlockSpec((Cs, 1), lambda i: (0, 0)),    # sub->main map, resident
            pl.BlockSpec((1, TB), lambda i: (0, i)),    # targets tile
            pl.BlockSpec((Cs, TB), lambda i: (0, i)),   # sub logits tile
            pl.BlockSpec((Cm, TB), lambda i: (0, i)),   # main logits tile
            # If a profile ever shows exposed DMA for small tiles, add
            # pipeline_mode=pl.Buffered(3) on the two logits specs.
        ],
        out_specs=pl.BlockSpec((1, 1), lambda i: (i, 0)),
        compiler_params=pltpu.CompilerParams(
            dimension_semantics=("parallel",),
            # Explicit ceiling with headroom; TB budget keeps real usage well
            # under this on v5e (16 MiB scoped default) .. v7x (64 MiB VMEM).
            vmem_limit_bytes=32 * 1024 * 1024),
    )(s2m2d, tgt2d, xT, xmT)

    # reduction='mean' as in the module default
    return jnp.sum(partials) / jnp.float32(B)
    # TODO(synk): reduction='none'/'sum' variants would return per-row losses;
    # only the default 'mean' path is implemented here.


def _reference_q2tl(x, target, x_main, sub2main, pseudo_conf_thres=0.2):
    """Pure-JAX reference mirroring the PyTorch module (reduction='mean')."""
    score_main = jax.nn.softmax(x_main, axis=1)
    pseudo = jnp.argmax(x, axis=1)
    prob_t = score_main[jnp.arange(x.shape[0]), sub2main[target]]
    prob_p = score_main[jnp.arange(x.shape[0]), sub2main[pseudo]]
    cond = (target != pseudo) & (prob_p >= pseudo_conf_thres)
    lam_sum = jnp.where(cond, prob_t + prob_p, 1.0)
    lam_t = jnp.where(cond, prob_t / lam_sum, 1.0)
    lam_c = jnp.where(cond, prob_p / lam_sum, 0.0)
    onehot_t = jax.nn.one_hot(target, x.shape[1])
    onehot_p = jax.nn.one_hot(pseudo, x.shape[1])
    corrected = onehot_t * lam_t[:, None] + onehot_p * lam_c[:, None]
    logp = jax.nn.log_softmax(x, axis=1)
    return jnp.mean(jnp.sum(-logp * corrected, axis=1))


if __name__ == "__main__":
    B, C_SUB, C_MAIN = 8, 16, 4

    key = jax.random.PRNGKey(0)
    kx, km, kt = jax.random.split(key, 3)
    x = jax.random.normal(kx, (B, C_SUB), dtype=jnp.float32) * 2.0
    x_main = jax.random.normal(km, (B, C_MAIN), dtype=jnp.float32) * 2.0
    target = jax.random.randint(kt, (B,), 0, C_SUB, dtype=jnp.int32)

    # Deterministic sub->main mapping (replaces the CSV mapping_file):
    # sub-class s belongs to main class s % C_MAIN.
    sub2main = jnp.arange(C_SUB, dtype=jnp.int32) % C_MAIN

    loss = q2tl_loss(x, target, x_main, sub2main, pseudo_conf_thres=0.2)
    loss = jax.block_until_ready(loss)

    ref = _reference_q2tl(x, target, x_main, sub2main, pseudo_conf_thres=0.2)
    assert jnp.allclose(loss, ref, rtol=1e-5, atol=1e-5), (loss, ref)

    print("KERNEL_OK")
</pallas_src>

<mosaic_0001>
module attributes {stable_mosaic.version = 11 : i64} {
  func.func @_q2tl_kernel(%arg0: i32, %arg1: memref<16x1xi32, #tpu.memory_space<vmem>>, %arg2: memref<1x8xi32, #tpu.memory_space<vmem>>, %arg3: memref<16x8xf32, #tpu.memory_space<vmem>>, %arg4: memref<4x8xf32, #tpu.memory_space<vmem>>, %arg5: memref<1x1xf32, #tpu.memory_space<vmem>>) attributes {dimension_semantics = [#tpu.dimension_semantics<parallel>], iteration_bounds = array<i64: 1>, scalar_prefetch = 0 : i64, scratch_operands = 0 : i64, tpu.core_type = #tpu.core_type<tc>, window_params = [{pipeline_mode = #tpu.pipeline_mode<synchronous>, transform_indices = @transform_0, window_bounds = array<i64: 16, 1>}, {transform_indices = @transform_1, window_bounds = array<i64: 1, 8>}, {transform_indices = @transform_2, window_bounds = array<i64: 16, 8>}, {transform_indices = @transform_3, window_bounds = array<i64: 4, 8>}, {transform_indices = @transform_4, window_bounds = array<i64: 1, 1>}]} {
    %c0 = arith.constant 0 : index
    %c0_0 = arith.constant 0 : index
    %0 = vector.load %arg3[%c0, %c0_0] : memref<16x8xf32, #tpu.memory_space<vmem>>, vector<16x8xf32>
    %c0_1 = arith.constant 0 : index
    %c0_2 = arith.constant 0 : index
    %1 = vector.load %arg4[%c0_1, %c0_2] : memref<4x8xf32, #tpu.memory_space<vmem>>, vector<4x8xf32>
    %c0_3 = arith.constant 0 : index
    %c0_4 = arith.constant 0 : index
    %2 = vector.load %arg2[%c0_3, %c0_4] : memref<1x8xi32, #tpu.memory_space<vmem>>, vector<1x8xi32>
    %c0_5 = arith.constant 0 : index
    %c0_6 = arith.constant 0 : index
    %3 = vector.load %arg1[%c0_5, %c0_6] : memref<16x1xi32, #tpu.memory_space<vmem>>, vector<16x1xi32>
    %4 = tpu.iota {dimensions = array<i32: 0>} : vector<16x8xi32>
    %cst = arith.constant dense<0xFF800000> : vector<8xf32>
    %5 = vector.multi_reduction <maximumf>, %0, %cst [0] : vector<16x8xf32> to vector<8xf32>
    %6 = vector.shape_cast %5 : vector<8xf32> to vector<1x8xf32>
    %7 = vector.broadcast %6 : vector<1x8xf32> to vector<16x8xf32>
    %8 = arith.subf %0, %7 : vector<16x8xf32>
    %9 = math.exp %8 : vector<16x8xf32>
    %cst_7 = arith.constant dense<0.000000e+00> : vector<8xf32>
    %10 = vector.multi_reduction <add>, %9, %cst_7 [0] : vector<16x8xf32> to vector<8xf32>
    %11 = vector.shape_cast %10 : vector<8xf32> to vector<1x8xf32>
    %12 = math.log %11 : vector<1x8xf32>
    %13 = vector.broadcast %6 : vector<1x8xf32> to vector<16x8xf32>
    %14 = arith.cmpf oeq, %0, %13 : vector<16x8xf32>
    %c16_i32 = arith.constant 16 : i32
    %15 = vector.broadcast %c16_i32 : i32 to vector<16x8xi32>
    %16 = arith.select %14, %4, %15 : vector<16x8xi1>, vector<16x8xi32>
    %cst_8 = arith.constant dense<2147483647> : vector<8xi32>
    %17 = vector.multi_reduction <minsi>, %16, %cst_8 [0] : vector<16x8xi32> to vector<8xi32>
    %18 = vector.shape_cast %17 : vector<8xi32> to vector<1x8xi32>
    %19 = vector.broadcast %2 : vector<1x8xi32> to vector<16x8xi32>
    %20 = arith.cmpi eq, %4, %19 : vector<16x8xi32>
    %21 = vector.broadcast %18 : vector<1x8xi32> to vector<16x8xi32>
    %22 = arith.cmpi eq, %4, %21 : vector<16x8xi32>
    %cst_9 = arith.constant 0.000000e+00 : f32
    %23 = vector.broadcast %cst_9 : f32 to vector<16x8xf32>
    %24 = arith.select %20, %0, %23 : vector<16x8xi1>, vector<16x8xf32>
    %cst_10 = arith.constant dense<0.000000e+00> : vector<8xf32>
    %25 = vector.multi_reduction <add>, %24, %cst_10 [0] : vector<16x8xf32> to vector<8xf32>
    %26 = vector.shape_cast %25 : vector<8xf32> to vector<1x8xf32>
    %27 = arith.subf %26, %6 : vector<1x8xf32>
    %28 = arith.subf %27, %12 : vector<1x8xf32>
    %cst_11 = arith.constant 0.000000e+00 : f32
    %29 = vector.broadcast %cst_11 : f32 to vector<1x8xf32>
    %30 = arith.subf %29, %12 : vector<1x8xf32>
    %c0_i32 = arith.constant 0 : i32
    %31 = vector.shape_cast %3 : vector<16x1xi32> to vector<16x1xi32>
    %32 = vector.broadcast %31 : vector<16x1xi32> to vector<16x8xi32>
    %33 = vector.broadcast %c0_i32 : i32 to vector<16x8xi32>
    %34 = arith.select %20, %32, %33 : vector<16x8xi1>, vector<16x8xi32>
    %cst_12 = arith.constant dense<0> : vector<8xi32>
    %35 = vector.multi_reduction <add>, %34, %cst_12 [0] : vector<16x8xi32> to vector<8xi32>
    %36 = vector.shape_cast %35 : vector<8xi32> to vector<1x8xi32>
    %c0_i32_13 = arith.constant 0 : i32
    %37 = vector.shape_cast %3 : vector<16x1xi32> to vector<16x1xi32>
    %38 = vector.broadcast %37 : vector<16x1xi32> to vector<16x8xi32>
    %39 = vector.broadcast %c0_i32_13 : i32 to vector<16x8xi32>
    %40 = arith.select %22, %38, %39 : vector<16x8xi1>, vector<16x8xi32>
    %cst_14 = arith.constant dense<0> : vector<8xi32>
    %41 = vector.multi_reduction <add>, %40, %cst_14 [0] : vector<16x8xi32> to vector<8xi32>
    %42 = vector.shape_cast %41 : vector<8xi32> to vector<1x8xi32>
    %43 = tpu.iota {dimensions = array<i32: 0>} : vector<4x8xi32>
    %cst_15 = arith.constant dense<0xFF800000> : vector<8xf32>
    %44 = vector.multi_reduction <maximumf>, %1, %cst_15 [0] : vector<4x8xf32> to vector<8xf32>
    %45 = vector.shape_cast %44 : vector<8xf32> to vector<1x8xf32>
    %46 = vector.broadcast %45 : vector<1x8xf32> to vector<4x8xf32>
    %47 = arith.subf %1, %46 : vector<4x8xf32>
    %48 = math.exp %47 : vector<4x8xf32>
    %cst_16 = arith.constant dense<0.000000e+00> : vector<8xf32>
    %49 = vector.multi_reduction <add>, %48, %cst_16 [0] : vector<4x8xf32> to vector<8xf32>
    %50 = vector.shape_cast %49 : vector<8xf32> to vector<1x8xf32>
    %51 = vector.broadcast %36 : vector<1x8xi32> to vector<4x8xi32>
    %52 = arith.cmpi eq, %43, %51 : vector<4x8xi32>
    %cst_17 = arith.constant 0.000000e+00 : f32
    %53 = vector.broadcast %cst_17 : f32 to vector<4x8xf32>
    %54 = arith.select %52, %48, %53 : vector<4x8xi1>, vector<4x8xf32>
    %cst_18 = arith.constant dense<0.000000e+00> : vector<8xf32>
    %55 = vector.multi_reduction <add>, %54, %cst_18 [0] : vector<4x8xf32> to vector<8xf32>
    %56 = vector.shape_cast %55 : vector<8xf32> to vector<1x8xf32>
    %57 = vector.broadcast %42 : vector<1x8xi32> to vector<4x8xi32>
    %58 = arith.cmpi eq, %43, %57 : vector<4x8xi32>
    %cst_19 = arith.constant 0.000000e+00 : f32
    %59 = vector.broadcast %cst_19 : f32 to vector<4x8xf32>
    %60 = arith.select %58, %48, %59 : vector<4x8xi1>, vector<4x8xf32>
    %cst_20 = arith.constant dense<0.000000e+00> : vector<8xf32>
    %61 = vector.multi_reduction <add>, %60, %cst_20 [0] : vector<4x8xf32> to vector<8xf32>
    %62 = vector.shape_cast %61 : vector<8xf32> to vector<1x8xf32>
    %63 = arith.cmpi ne, %2, %18 : vector<1x8xi32>
    %cst_21 = arith.constant 2.000000e-01 : f32
    %64 = vector.broadcast %cst_21 : f32 to vector<1x8xf32>
    %65 = arith.mulf %64, %50 : vector<1x8xf32>
    %66 = arith.cmpf oge, %62, %65 : vector<1x8xf32>
    %67 = arith.andi %63, %66 : vector<1x8xi1>
    %68 = arith.addf %56, %62 : vector<1x8xf32>
    %cst_22 = arith.constant 1.000000e+00 : f32
    %69 = vector.broadcast %cst_22 : f32 to vector<1x8xf32>
    %70 = arith.select %67, %68, %69 : vector<1x8xi1>, vector<1x8xf32>
    %71 = tpu.reciprocal %70 : vector<1x8xf32> -> vector<1x8xf32>
    %72 = arith.mulf %56, %71 : vector<1x8xf32>
    %cst_23 = arith.constant 1.000000e+00 : f32
    %73 = vector.broadcast %cst_23 : f32 to vector<1x8xf32>
    %74 = arith.select %67, %72, %73 : vector<1x8xi1>, vector<1x8xf32>
    %75 = arith.mulf %62, %71 : vector<1x8xf32>
    %cst_24 = arith.constant 0.000000e+00 : f32
    %76 = vector.broadcast %cst_24 : f32 to vector<1x8xf32>
    %77 = arith.select %67, %75, %76 : vector<1x8xi1>, vector<1x8xf32>
    %78 = arith.mulf %74, %28 : vector<1x8xf32>
    %79 = arith.mulf %77, %30 : vector<1x8xf32>
    %80 = arith.addf %78, %79 : vector<1x8xf32>
    %cst_25 = arith.constant 0.000000e+00 : f32
    %81 = vector.broadcast %cst_25 : f32 to vector<1x8xf32>
    %82 = arith.subf %81, %80 : vector<1x8xf32>
    %cst_26 = arith.constant dense<0.000000e+00> : vector<1xf32>
    %83 = vector.multi_reduction <add>, %82, %cst_26 [1] : vector<1x8xf32> to vector<1xf32>
    %84 = vector.shape_cast %83 : vector<1xf32> to vector<1x1xf32>
    %c0_27 = arith.constant 0 : index
    %c0_28 = arith.constant 0 : index
    %85 = vector.load %arg5[%c0_27, %c0_28] : memref<1x1xf32, #tpu.memory_space<vmem>>, vector<1x1xf32>
    tpu.vector_store %arg5[%c0_27, %c0_28], %84 {strides = array<i32>} : memref<1x1xf32, #tpu.memory_space<vmem>>, vector<1x1xf32>,
    return
  }
  func.func @transform_0(%arg0: i32) -> (i32, i32) {
    %c0_i32 = arith.constant 0 : i32
    %c0_i32_0 = arith.constant 0 : i32
    %c0_i32_1 = arith.constant 0 : i32
    return %c0_i32, %c0_i32_0 : i32, i32
  }
  func.func @transform_1(%arg0: i32) -> (i32, i32) {
    %c0_i32 = arith.constant 0 : i32
    %c0_i32_0 = arith.constant 0 : i32
    return %c0_i32, %arg0 : i32, i32
  }
  func.func @transform_2(%arg0: i32) -> (i32, i32) {
    %c0_i32 = arith.constant 0 : i32
    %c0_i32_0 = arith.constant 0 : i32
    return %c0_i32, %arg0 : i32, i32
  }
  func.func @transform_3(%arg0: i32) -> (i32, i32) {
    %c0_i32 = arith.constant 0 : i32
    %c0_i32_0 = arith.constant 0 : i32
    return %c0_i32, %arg0 : i32, i32
  }
  func.func @transform_4(%arg0: i32) -> (i32, i32) {
    %c0_i32 = arith.constant 0 : i32
    %c0_i32_0 = arith.constant 0 : i32
    return %arg0, %c0_i32 : i32, i32
  }
}

</mosaic_0001>

<llo_original>
// kernel: tpu_custom_call.1
$region0: #{tpu_custom_call.1}
  #allocation0 [shape = 'u32[]', space=smem, size = 0x4, offset = 0x4, fixed_abs, tag = 'smem constant byte address 0x4 - core index']
  #allocation1 [shape = 'u32[144,128]{1,0:T(1,128)}', space=vmem, size = 0x12000, scoped, tag = 'internal scratch']
  %s0 = inlined_call_operand.vmem [shape: s32[16,1], index: 0, kind: input, shape index: {}]
  %s1 = inlined_call_operand.vmem [shape: s32[1,8], index: 1, kind: input, shape index: {}]
  %s2 = inlined_call_operand.vmem [shape: f32[16,8], index: 2, kind: input, shape index: {}]
  %s3 = inlined_call_operand.vmem [shape: f32[4,8], index: 3, kind: input, shape index: {}]
  %s4 = inlined_call_operand.hbm [shape: f32[1,1], index: 4, kind: output, shape index: {}]
  %s5 = sld [smem:[#allocation0]]
  $region26: #{tpu_custom_call.1} parent=0
    _
  %s7 = ssub.s32 1, %s5
  %s8 = scalar_select 0, %s7, %s5
  $region1: #{tpu_custom_call.1} parent=0
    #allocation2 [shape = 'u8[512]{0}', space=vmem, size = 0x400, scoped, tag = 'output window, operand 0, single buffered']
    #allocation3 [shape = 's32[1]{0}', space=sflag, size = 0x4, scoped, tag = 'scoped memory for tpu_custom_call.1']
    %9 = vsyncpa [#allocation3], 0
    // Predicated region
    $region2: #{tpu_custom_call.1} parent=1 // pred_check
      _
    $region3: #{tpu_custom_call.1} parent=1 // pred_check_branch
      %11 = sbr.rel (0) target = $region5
    $region4: #{tpu_custom_call.1} parent=1 // pred_region
      _
    $region5: #{tpu_custom_call.1} parent=1 // pred_fallthru
      _
    // Predicated region
    $region6: #{tpu_custom_call.1} parent=1 // pred_check
      _
    $region7: #{tpu_custom_call.1} parent=1 // pred_check_branch
      %13 = sbr.rel (0) target = $region9
    $region8: #{tpu_custom_call.1} parent=1 // pred_region
      _
    $region9: #{tpu_custom_call.1} parent=1 // pred_fallthru
      _
    // Predicated region
    $region10: #{tpu_custom_call.1} parent=1 // pred_check
      _
    $region11: #{tpu_custom_call.1} parent=1 // pred_check_branch
      %15 = sbr.rel (0) target = $region13
    $region12: #{tpu_custom_call.1} parent=1 // pred_region
      _
    $region13: #{tpu_custom_call.1} parent=1 // pred_fallthru
      _
    // Predicated region
    $region14: #{tpu_custom_call.1} parent=1 // pred_check
      _
    $region15: #{tpu_custom_call.1} parent=1 // pred_check_branch
      %17 = sbr.rel (0) target = $region17
    $region16: #{tpu_custom_call.1} parent=1 // pred_region
      _
    $region17: #{tpu_custom_call.1} parent=1 // pred_fallthru
      _
    %v18 = vld [vmem:[%s2] sm:$0xff]
    %v19 = vld [vmem:[%s2 + $0x8] sm:$0xff]
    %v20 = vld [vmem:[%s3] sm:$0xf]
    %v21 = vld [vmem:[%s1] sm:$0x1]
    %v22 = vld [vmem:[%s0] sm:$0xff]
    %v23 = vld [vmem:[%s0 + $0x8] sm:$0xff]
    %v24 = vlaneseq
    %v25 = vshrl.u32 %v24, 7
    %v26 = vadd.s32 %v25, 8
    %vm27 = vcmask 64512
    %v28 = vsel %vm27, %v18, -inf
    %v29 = vsel %vm27, %v19, -inf
    %v30 = vmax.f32 %v28, %v29
    %v31 = vrot.slane %v30, 4
    %v32 = vmax.f32 %v30, %v31
    %v33 = vrot.slane %v32, 2
    %v34 = vmax.f32 %v32, %v33
    %v35 = vrot.slane %v34, 1
    %v36 = vmax.f32 %v34, %v35
    %v37 = vsub.f32 %v18, %v36
    %v38 = vsub.f32 %v19, %v36
    %v39 = vmul.f32 %v37, 1.442695
    %v40 = vpow.pop %v39
    %v41 = vmul.f32 %v38, 1.442695
    %v42 = vpow.pop %v41
    %v43 = vsel %vm27, %v40, 0.0
    %v44 = vsel %vm27, %v42, 0.0
    %v45 = vadd.f32 %v43, %v44
    %v46 = vrot.slane %v45, 4
    %v47 = vadd.f32 %v45, %v46
    %v48 = vrot.slane %v47, 2
    %v49 = vadd.f32 %v47, %v48
    %v50 = vrot.slane %v49, 1
    %v51 = vadd.f32 %v49, %v50
    %v52 = vlog2.pop %v51
    %v53 = vmul.f32 %v52, 0.6931472
    %vm54 = vcmp.eq.f32.partialorder %v18, %v36
    %vm55 = vcmp.eq.f32.partialorder %v19, %v36
    %v56 = vsel %vm54, %v25, 16
    %v57 = vsel %vm55, %v26, 16
    %v58 = vsel %vm27, %v56, 2147483647
    %v59 = vsel %vm27, %v57, 2147483647
    %vm60 = vcmp.lt.s32.totalorder %v58, %v59
    %v61 = vsel %vm60, %v58, %v59
    %v62 = vrot.slane %v61, 4
    %vm63 = vcmp.lt.s32.totalorder %v61, %v62
    %v64 = vsel %vm63, %v61, %v62
    %v65 = vrot.slane %v64, 2
    %vm66 = vcmp.lt.s32.totalorder %v64, %v65
    %v67 = vsel %vm66, %v64, %v65
    %v68 = vrot.slane %v67, 1
    %vm69 = vcmp.lt.s32.totalorder %v67, %v68
    %v70 = vsel %vm69, %v67, %v68
    %v71 = vlaneseq
    %v72 = vshrl.u32 %v71, 7
    %v73 = vsub.s32 0, %v72
    %v74 = vrot.slane %v21, %v73
    %vm75 = vcmp.eq.s32.totalorder %v25, %v74
    %vm76 = vcmp.eq.s32.totalorder %v26, %v74
    %vm77 = vcmp.eq.s32.totalorder %v25, %v70
    %vm78 = vcmp.eq.s32.totalorder %v26, %v70
    %v79 = vsel %vm75, %v18, 0.0
    %v80 = vsel %vm76, %v19, 0.0
    %v81 = vsel %vm27, %v79, 0.0
    %v82 = vsel %vm27, %v80, 0.0
    %v83 = vadd.f32 %v81, %v82
    %v84 = vrot.slane %v83, 4
    %v85 = vadd.f32 %v83, %v84
    %v86 = vrot.slane %v85, 2
    %v87 = vadd.f32 %v85, %v86
    %v88 = vrot.slane %v87, 1
    %v89 = vadd.f32 %v87, %v88
    %v90 = vsub.f32 %v89, %v36
    %v91 = vsub.f32 %v90, %v53
    %v92 = vsub.f32 0.0, %v53
    %93 = vset.pattern.permute.xlu0 0
    %94 = vperm.xlu0 %93, %v22
    %v95 = vpop.permute.xlu0 %94
    %96 = vset.pattern.permute.xlu0 0
    %97 = vperm.xlu0 %96, %v23
    %v98 = vpop.permute.xlu0 %97
    %v99 = vsel %vm75, %v95, 0
    %v100 = vsel %vm76, %v98, 0
    %v101 = vsel %vm27, %v99, 0
    %v102 = vsel %vm27, %v100, 0
    %v103 = vadd.s32 %v101, %v102
    %v104 = vrot.slane %v103, 4
    %v105 = vadd.s32 %v103, %v104
    %v106 = vrot.slane %v105, 2
    %v107 = vadd.s32 %v105, %v106
    %v108 = vrot.slane %v107, 1
    %v109 = vadd.s32 %v107, %v108
    %v110 = vsel %vm77, %v95, 0
    %v111 = vsel %vm78, %v98, 0
    %v112 = vsel %vm27, %v110, 0
    %v113 = vsel %vm27, %v111, 0
    %v114 = vadd.s32 %v112, %v113
    %v115 = vrot.slane %v114, 4
    %v116 = vadd.s32 %v114, %v115
    %v117 = vrot.slane %v116, 2
    %v118 = vadd.s32 %v116, %v117
    %v119 = vrot.slane %v118, 1
    %v120 = vadd.s32 %v118, %v119
    %vm121 = vcmask 60416
    %v122 = vsel %vm121, %v20, -inf
    %v123 = vrot.slane %v122, 4
    %v124 = vmax.f32 %v122, %v123
    %v125 = vrot.slane %v124, 2
    %v126 = vmax.f32 %v124, %v125
    %v127 = vrot.slane %v126, 1
    %v128 = vmax.f32 %v126, %v127
    %v129 = vsub.f32 %v20, %v128
    %v130 = vmul.f32 %v129, 1.442695
    %v131 = vpow.pop %v130
    %v132 = vsel %vm121, %v131, 0.0
    %v133 = vrot.slane %v132, 4
    %v134 = vadd.f32 %v132, %v133
    %v135 = vrot.slane %v134, 2
    %v136 = vadd.f32 %v134, %v135
    %v137 = vrot.slane %v136, 1
    %v138 = vadd.f32 %v136, %v137
    %vm139 = vcmp.eq.s32.totalorder %v25, %v109
    %v140 = vsel %vm139, %v131, 0.0
    %v141 = vsel %vm121, %v140, 0.0
    %v142 = vrot.slane %v141, 4
    %v143 = vadd.f32 %v141, %v142
    %v144 = vrot.slane %v143, 2
    %v145 = vadd.f32 %v143, %v144
    %v146 = vrot.slane %v145, 1
    %v147 = vadd.f32 %v145, %v146
    %vm148 = vcmp.eq.s32.totalorder %v25, %v120
    %v149 = vsel %vm148, %v131, 0.0
    %v150 = vsel %vm121, %v149, 0.0
    %v151 = vrot.slane %v150, 4
    %v152 = vadd.f32 %v150, %v151
    %v153 = vrot.slane %v152, 2
    %v154 = vadd.f32 %v152, %v153
    %v155 = vrot.slane %v154, 1
    %v156 = vadd.f32 %v154, %v155
    %vm157 = vcmp.ne.s32.totalorder %v21, %v70
    %v158 = vmul.f32 %v138, 0.2
    %vm159 = vcmp.ge.f32.partialorder %v156, %v158
    %vm160 = vmand %vm157, %vm159
    %v161 = vadd.f32 %v147, %v156
    %v162 = vsel %vm160, %v161, 1.0
    %v163 = vrcp.pop %v162
    %v164 = vmul.f32 %v147, %v163
    %v165 = vsel %vm160, %v164, 1.0
    %v166 = vmul.f32 %v156, %v163
    %v167 = vsel %vm160, %v166, 0.0
    %v168 = vmul.f32 %v165, %v91
    %v169 = vmul.f32 %v167, %v92
    %v170 = vadd.f32 %v168, %v169
    %v171 = vsub.f32 0.0, %v170
    %vm172 = vcmask 57344
    %v173 = vsel %vm172, %v171, 0.0
    %174 = vadd.xlane.f32.xlu0 %v173
    %v175 = vpop.xlane.xlu0 %174
    %vm176 = vcmask 0
    %177 = vst.msk [vmem:[#allocation2] sm:$0x1] %vm176, %v175
    // Predicated region
    $region18: #{tpu_custom_call.1} parent=1 // pred_check
      _
    $region19: #{tpu_custom_call.1} parent=1 // pred_check_branch
      %179 = sbr.rel (0) target = $region21
    $region20: #{tpu_custom_call.1} parent=1 // pred_region
      %s181 = ssub.s32 16, 16
      %182 = vsyncadd [#allocation3], %s181
      %s184 = sshll.u32 [#allocation2], 4
      %s185 = int_to_ptr.vmem [resolvable:$true] %s184
      %187 = dma.vmem_to_hbm [thread:$0]  %s185, 16, %s4, [#allocation3]
    $region21: #{tpu_custom_call.1} parent=1 // pred_fallthru
      _
    // Predicated region
    $region22: #{tpu_custom_call.1} parent=1 // pred_check
      _
    $region23: #{tpu_custom_call.1} parent=1 // pred_check_branch
      %189 = sbr.rel (0) target = $region25
    $region24: #{tpu_custom_call.1} parent=1 // pred_region
      %190 = dma.done [#allocation3], 16
    $region25: #{tpu_custom_call.1} parent=1 // pred_fallthru
      _
    %191 = vsyncpa [#allocation3], 1

</llo_original>
